<compile_context>
chip_gen: v7x
topology: tpu7x:2x2x1
jax: 0.10.0
libtpu: 0.0.40
codegen_flags: <defaults>
</compile_context>

<pallas_src>
import jax
import jax.numpy as jnp
from jax.experimental import pallas as pl
from jax.experimental.pallas import tpu as pltpu

HIDDEN = 100       # logical hidden size (matches the PyTorch module)
HIDDEN_PAD = 128   # padded to a full lane width
LANE = 128


def _round_up(n, m):
    return ((n + m - 1) // m) * m


def _choose_tile(B, block_batch):
    """Lane-aligned batch tile; >=2 tiles whenever possible so both v7x TCs work."""
    B_pad0 = _round_up(max(B, 1), LANE)
    bb = max(_round_up(block_batch, LANE), LANE)
    n_tiles = -(-B_pad0 // bb)
    if B_pad0 >= 2 * LANE:
        n_tiles = max(2, n_tiles)          # megacore: give each TC at least one tile
    TB = _round_up(-(-B_pad0 // n_tiles), LANE)
    B_pad = _round_up(B_pad0, TB)
    return TB, B_pad


def _sigmoid(x):
    # EUP tanh instead of a VALU divide: sigmoid(x) = 0.5 * tanh(0.5*x) + 0.5
    return 0.5 * jnp.tanh(0.5 * x) + 0.5


def _mlp_kernel(xt_ref, w1t_ref, b1_ref, w2t_ref, b2_ref, w3_ref, b3_ref, o_ref):
    """One batch tile, feature-major: activations are (128, TB)."""
    xt = xt_ref[...]                                        # (2, TB) f32

    # Layer 1: K=2 -> two VPU broadcast multiply-adds, (128,1)x(1,TB) -> (128,TB).
    h1 = (w1t_ref[:, 0:1] * xt[0:1, :]
          + w1t_ref[:, 1:2] * xt[1:2, :]
          + b1_ref[...])                                    # (128, TB)
    h1 = _sigmoid(h1)

    # Layer 2: dense (128,128)@(128,TB) on the MXU; operands cast to W2's dtype
    # (bf16 by default), accumulation + bias + sigmoid stay f32.
    h2 = jnp.dot(w2t_ref[...], h1.astype(w2t_ref.dtype),
                 preferred_element_type=jnp.float32)
    h2 = _sigmoid(h2 + b2_ref[...])                         # (128, TB)

    # Layer 3: N=1 -> VPU multiply + XLU sublane-reduce; lane-dense (1, TB) result.
    # Padded rows of w3 are zero so padded h2 rows drop out.
    o = jnp.sum(h2 * w3_ref[...], axis=0, keepdims=True) + b3_ref[0, 0]
    o_ref[...] = o.astype(o_ref.dtype)


def _pad_params(params, use_bf16_matmul):
    """Zero-pad logical (2,100)/(100,100)/(100,1) params into feature-major tiles."""
    f32 = jnp.float32
    w1t = jnp.zeros((HIDDEN_PAD, 2), f32).at[:HIDDEN, :].set(params["w1"].T)
    b1c = jnp.zeros((HIDDEN_PAD, 1), f32).at[:HIDDEN, 0].set(params["b1"][0])
    # Zero the padded *input* columns of W2^T (so the sigmoid(0)=0.5 padded h1 rows
    # contribute nothing) as well as the padded output rows.
    w2t = jnp.zeros((HIDDEN_PAD, HIDDEN_PAD), f32).at[:HIDDEN, :HIDDEN].set(params["w2"].T)
    b2c = jnp.zeros((HIDDEN_PAD, 1), f32).at[:HIDDEN, 0].set(params["b2"][0])
    w3c = jnp.zeros((HIDDEN_PAD, 1), f32).at[:HIDDEN, 0].set(params["w3"][:, 0])
    b3 = params["b3"].reshape(1, 1).astype(f32)
    if use_bf16_matmul:
        w2t = w2t.astype(jnp.bfloat16)
    return w1t, b1c, w2t, b2c, w3c, b3


def neural_net_forward(x, params, *, block_batch=8192, use_bf16_matmul=True):
    """x: (B, 2) float32 -> (B, 1) float32."""
    assert x.ndim == 2 and x.shape[1] == 2, x.shape
    x = x.astype(jnp.float32)
    w1t, b1c, w2t, b2c, w3c, b3 = _pad_params(params, use_bf16_matmul)

    B = x.shape[0]
    TB, B_pad = _choose_tile(B, block_batch)
    xt = jnp.pad(x, ((0, B_pad - B), (0, 0))).T              # (2, B_pad), pads zero
    grid = (B_pad // TB,)

    # Weights/biases: full-array blocks with constant index_map -> stay VMEM-resident.
    const = lambda a: pl.BlockSpec(a.shape, lambda i: (0,) * a.ndim)

    out = pl.pallas_call(
        _mlp_kernel,
        out_shape=jax.ShapeDtypeStruct((1, B_pad), jnp.float32),
        grid=grid,
        in_specs=[
            pl.BlockSpec((2, TB), lambda i: (0, i)),          # x^T, lane-tiled over batch
            const(w1t), const(b1c), const(w2t), const(b2c), const(w3c),
            pl.BlockSpec(memory_space=pltpu.MemorySpace.SMEM),  # b3 scalar in SMEM
        ],
        out_specs=pl.BlockSpec((1, TB), lambda i: (0, i)),    # lane-dense output row
        compiler_params=pltpu.CompilerParams(
            dimension_semantics=("parallel",)),               # megacore sharding on v7x
    )(xt, w1t, b1c, w2t, b2c, w3c, b3)
    return out[0, :B].reshape(B, 1)


def init_params(key):
    """PyTorch nn.Linear default init (U(-1/sqrt(fan_in), +)), stored as (in, out)."""
    def linear(key, fan_in, fan_out):
        kw, kb = jax.random.split(key)
        bound = 1.0 / jnp.sqrt(float(fan_in))
        w = jax.random.uniform(kw, (fan_in, fan_out), jnp.float32, -bound, bound)
        b = jax.random.uniform(kb, (1, fan_out), jnp.float32, -bound, bound)
        return w, b

    k1, k2, k3 = jax.random.split(key, 3)
    w1, b1 = linear(k1, 2, 100)
    w2, b2 = linear(k2, 100, 100)
    w3, b3 = linear(k3, 100, 1)
    return {"w1": w1, "b1": b1, "w2": w2, "b2": b2, "w3": w3, "b3": b3}


def _reference(x, p):
    h1 = jax.nn.sigmoid(x @ p["w1"] + p["b1"])
    h2 = jax.nn.sigmoid(h1 @ p["w2"] + p["b2"])
    return h2 @ p["w3"] + p["b3"]


if __name__ == "__main__":
    key = jax.random.PRNGKey(0)
    kp, kx = jax.random.split(key)
    params = init_params(kp)

    # Small test batch, input shape (batch, 2) as implied by nn.Linear(2, 100).
    x = jax.random.normal(kx, (8, 2), jnp.float32)
    ref = _reference(x, params)

    # Default path: bf16 MXU operands, f32 accumulation (loose tolerance expected).
    out = jax.block_until_ready(neural_net_forward(x, params))
    assert out.shape == (8, 1), out.shape
    assert jnp.allclose(out, ref, atol=2e-2, rtol=2e-2), (out, ref)

    # Full-f32 path: tight tolerance (tanh-based sigmoid differs by a few ULPs).
    out_f32 = jax.block_until_ready(neural_net_forward(x, params, use_bf16_matmul=False))
    assert jnp.allclose(out_f32, ref, atol=1e-4, rtol=1e-4), (out_f32, ref)

    # Multi-tile path: B=300 with block_batch=128 -> 3 lane-aligned batch tiles.
    x2 = jax.random.normal(jax.random.PRNGKey(1), (300, 2), jnp.float32)
    out2 = jax.block_until_ready(
        neural_net_forward(x2, params, block_batch=128, use_bf16_matmul=False))
    assert out2.shape == (300, 1), out2.shape
    assert jnp.allclose(out2, _reference(x2, params), atol=1e-4, rtol=1e-4)

    print("KERNEL_OK")
</pallas_src>

<mosaic_0001>
module attributes {stable_mosaic.version = 11 : i64} {
  func.func @_mlp_kernel(%arg0: i32, %arg1: memref<2x128xf32, #tpu.memory_space<vmem>>, %arg2: memref<128x2xf32, #tpu.memory_space<vmem>>, %arg3: memref<128x1xf32, #tpu.memory_space<vmem>>, %arg4: memref<128x128xbf16, #tpu.memory_space<vmem>>, %arg5: memref<128x1xf32, #tpu.memory_space<vmem>>, %arg6: memref<128x1xf32, #tpu.memory_space<vmem>>, %arg7: memref<1x1xf32, #tpu.memory_space<smem>>, %arg8: memref<1x128xf32, #tpu.memory_space<vmem>>) attributes {dimension_semantics = [#tpu.dimension_semantics<parallel>], iteration_bounds = array<i64: 1>, scalar_prefetch = 0 : i64, scratch_operands = 0 : i64, tpu.core_type = #tpu.core_type<tc>, window_params = [{transform_indices = @transform_0, window_bounds = array<i64: 2, 128>}, {pipeline_mode = #tpu.pipeline_mode<synchronous>, transform_indices = @transform_1, window_bounds = array<i64: 128, 2>}, {pipeline_mode = #tpu.pipeline_mode<synchronous>, transform_indices = @transform_2, window_bounds = array<i64: 128, 1>}, {pipeline_mode = #tpu.pipeline_mode<synchronous>, transform_indices = @transform_3, window_bounds = array<i64: 128, 128>}, {pipeline_mode = #tpu.pipeline_mode<synchronous>, transform_indices = @transform_4, window_bounds = array<i64: 128, 1>}, {pipeline_mode = #tpu.pipeline_mode<synchronous>, transform_indices = @transform_5, window_bounds = array<i64: 128, 1>}, {transform_indices = @transform_6, window_bounds = array<i64: 1, 1>}, {transform_indices = @transform_7, window_bounds = array<i64: 1, 128>}]} {
    %c0 = arith.constant 0 : index
    %c0_0 = arith.constant 0 : index
    %0 = vector.load %arg1[%c0, %c0_0] : memref<2x128xf32, #tpu.memory_space<vmem>>, vector<2x128xf32>
    %c0_1 = arith.constant 0 : index
    %c0_2 = arith.constant 0 : index
    %1 = vector.load %arg2[%c0_1, %c0_2] : memref<128x2xf32, #tpu.memory_space<vmem>>, vector<128x1xf32>
    %2 = vector.extract_strided_slice %0 {offsets = [0, 0], sizes = [1, 128], strides = [1, 1]} : vector<2x128xf32> to vector<1x128xf32>
    %3 = vector.broadcast %1 : vector<128x1xf32> to vector<128x128xf32>
    %4 = vector.broadcast %2 : vector<1x128xf32> to vector<128x128xf32>
    %5 = arith.mulf %3, %4 : vector<128x128xf32>
    %c0_3 = arith.constant 0 : index
    %c1 = arith.constant 1 : index
    %6 = vector.load %arg2[%c0_3, %c1] : memref<128x2xf32, #tpu.memory_space<vmem>>, vector<128x1xf32>
    %7 = vector.extract_strided_slice %0 {offsets = [1, 0], sizes = [1, 128], strides = [1, 1]} : vector<2x128xf32> to vector<1x128xf32>
    %8 = vector.broadcast %6 : vector<128x1xf32> to vector<128x128xf32>
    %9 = vector.broadcast %7 : vector<1x128xf32> to vector<128x128xf32>
    %10 = arith.mulf %8, %9 : vector<128x128xf32>
    %11 = arith.addf %5, %10 : vector<128x128xf32>
    %c0_4 = arith.constant 0 : index
    %c0_5 = arith.constant 0 : index
    %12 = vector.load %arg3[%c0_4, %c0_5] : memref<128x1xf32, #tpu.memory_space<vmem>>, vector<128x1xf32>
    %13 = vector.broadcast %12 : vector<128x1xf32> to vector<128x128xf32>
    %14 = arith.addf %11, %13 : vector<128x128xf32>
    %cst = arith.constant 5.000000e-01 : f32
    %15 = vector.broadcast %cst : f32 to vector<128x128xf32>
    %16 = arith.mulf %15, %14 : vector<128x128xf32>
    %17 = math.tanh %16 : vector<128x128xf32>
    %cst_6 = arith.constant 5.000000e-01 : f32
    %18 = vector.broadcast %cst_6 : f32 to vector<128x128xf32>
    %19 = arith.mulf %18, %17 : vector<128x128xf32>
    %cst_7 = arith.constant 5.000000e-01 : f32
    %20 = vector.broadcast %cst_7 : f32 to vector<128x128xf32>
    %21 = arith.addf %19, %20 : vector<128x128xf32>
    %c0_8 = arith.constant 0 : index
    %c0_9 = arith.constant 0 : index
    %22 = vector.load %arg4[%c0_8, %c0_9] : memref<128x128xbf16, #tpu.memory_space<vmem>>, vector<128x128xbf16>
    %23 = arith.truncf %21 : vector<128x128xf32> to vector<128x128xbf16>
    %cst_10 = arith.constant dense<0.000000e+00> : vector<128x128xf32>
    %24 = tpu.matmul %22, %23, %cst_10 {dimension_numbers = #tpu.dot_dimension_numbers<[1], [0], [0], [1], [0, 0, 1, 1], [], []>} : vector<128x128xbf16>, vector<128x128xbf16>, vector<128x128xf32> -> vector<128x128xf32>
    %c0_11 = arith.constant 0 : index
    %c0_12 = arith.constant 0 : index
    %25 = vector.load %arg5[%c0_11, %c0_12] : memref<128x1xf32, #tpu.memory_space<vmem>>, vector<128x1xf32>
    %26 = vector.broadcast %25 : vector<128x1xf32> to vector<128x128xf32>
    %27 = arith.addf %24, %26 : vector<128x128xf32>
    %cst_13 = arith.constant 5.000000e-01 : f32
    %28 = vector.broadcast %cst_13 : f32 to vector<128x128xf32>
    %29 = arith.mulf %28, %27 : vector<128x128xf32>
    %30 = math.tanh %29 : vector<128x128xf32>
    %cst_14 = arith.constant 5.000000e-01 : f32
    %31 = vector.broadcast %cst_14 : f32 to vector<128x128xf32>
    %32 = arith.mulf %31, %30 : vector<128x128xf32>
    %cst_15 = arith.constant 5.000000e-01 : f32
    %33 = vector.broadcast %cst_15 : f32 to vector<128x128xf32>
    %34 = arith.addf %32, %33 : vector<128x128xf32>
    %c0_16 = arith.constant 0 : index
    %c0_17 = arith.constant 0 : index
    %35 = vector.load %arg6[%c0_16, %c0_17] : memref<128x1xf32, #tpu.memory_space<vmem>>, vector<128x1xf32>
    %36 = vector.broadcast %35 : vector<128x1xf32> to vector<128x128xf32>
    %37 = arith.mulf %34, %36 : vector<128x128xf32>
    %cst_18 = arith.constant dense<0.000000e+00> : vector<128xf32>
    %38 = vector.multi_reduction <add>, %37, %cst_18 [0] : vector<128x128xf32> to vector<128xf32>
    %39 = vector.shape_cast %38 : vector<128xf32> to vector<1x128xf32>
    %c0_19 = arith.constant 0 : index
    %c0_20 = arith.constant 0 : index
    %40 = memref.load %arg7[%c0_19, %c0_20] : memref<1x1xf32, #tpu.memory_space<smem>>
    %41 = vector.broadcast %40 : f32 to vector<1x128xf32>
    %42 = arith.addf %39, %41 : vector<1x128xf32>
    %c0_21 = arith.constant 0 : index
    %c0_22 = arith.constant 0 : index
    %43 = vector.load %arg8[%c0_21, %c0_22] : memref<1x128xf32, #tpu.memory_space<vmem>>, vector<1x128xf32>
    tpu.vector_store %arg8[%c0_21, %c0_22], %42 {strides = array<i32>} : memref<1x128xf32, #tpu.memory_space<vmem>>, vector<1x128xf32>,
    return
  }
  func.func @transform_0(%arg0: i32) -> (i32, i32) {
    %c0_i32 = arith.constant 0 : i32
    %c0_i32_0 = arith.constant 0 : i32
    return %c0_i32, %arg0 : i32, i32
  }
  func.func @transform_1(%arg0: i32) -> (i32, i32) {
    %c0_i32 = arith.constant 0 : i32
    %c0_i32_0 = arith.constant 0 : i32
    %c0_i32_1 = arith.constant 0 : i32
    return %c0_i32, %c0_i32_0 : i32, i32
  }
  func.func @transform_2(%arg0: i32) -> (i32, i32) {
    %c0_i32 = arith.constant 0 : i32
    %c0_i32_0 = arith.constant 0 : i32
    %c0_i32_1 = arith.constant 0 : i32
    return %c0_i32, %c0_i32_0 : i32, i32
  }
  func.func @transform_3(%arg0: i32) -> (i32, i32) {
    %c0_i32 = arith.constant 0 : i32
    %c0_i32_0 = arith.constant 0 : i32
    %c0_i32_1 = arith.constant 0 : i32
    return %c0_i32, %c0_i32_0 : i32, i32
  }
  func.func @transform_4(%arg0: i32) -> (i32, i32) {
    %c0_i32 = arith.constant 0 : i32
    %c0_i32_0 = arith.constant 0 : i32
    %c0_i32_1 = arith.constant 0 : i32
    return %c0_i32, %c0_i32_0 : i32, i32
  }
  func.func @transform_5(%arg0: i32) -> (i32, i32) {
    %c0_i32 = arith.constant 0 : i32
    %c0_i32_0 = arith.constant 0 : i32
    %c0_i32_1 = arith.constant 0 : i32
    return %c0_i32, %c0_i32_0 : i32, i32
  }
  func.func @transform_6(%arg0: i32) -> (i32, i32) {
    %c0_i32 = arith.constant 0 : i32
    %c0_i32_0 = arith.constant 0 : i32
    %c0_i32_1 = arith.constant 0 : i32
    return %c0_i32, %c0_i32_0 : i32, i32
  }
  func.func @transform_7(%arg0: i32) -> (i32, i32) {
    %c0_i32 = arith.constant 0 : i32
    %c0_i32_0 = arith.constant 0 : i32
    return %c0_i32, %arg0 : i32, i32
  }
}

</mosaic_0001>

<llo_original>
// kernel: tpu_custom_call.1
$region0: #{tpu_custom_call.1}
  #allocation0 [shape = 'u32[]', space=smem, size = 0x4, offset = 0x4, fixed_abs, tag = 'smem constant byte address 0x4 - core index']
  #allocation1 [shape = 'u32[144,128]{1,0:T(1,128)}', space=vmem, size = 0x12000, scoped, tag = 'internal scratch']
  #allocation2 [shape = 'f32[1,1]{1,0:T(1,128)S(6)}', space=smem, size = 0x200, scoped, tag = 'scoped memory for tpu_custom_call.1']
  %s0 = inlined_call_operand.vmem [shape: f32[2,128], index: 0, kind: input, shape index: {}]
  %s1 = inlined_call_operand.vmem [shape: f32[128,2], index: 1, kind: input, shape index: {}]
  %s2 = inlined_call_operand.vmem [shape: f32[128,1], index: 2, kind: input, shape index: {}]
  %s3 = inlined_call_operand.vmem [shape: bf16[128,128], index: 3, kind: input, shape index: {}]
  %s4 = inlined_call_operand.vmem [shape: f32[128,1], index: 4, kind: input, shape index: {}]
  %s5 = inlined_call_operand.vmem [shape: f32[128,1], index: 5, kind: input, shape index: {}]
  %s6 = inlined_call_operand.<no memory space> [shape: f32[1,1], index: 6, kind: input, shape index: {}]
  %s7 = inlined_call_operand.hbm [shape: f32[1,128], index: 7, kind: output, shape index: {}]
  %s8 = sld [smem:[#allocation0]]
  $region38: #{tpu_custom_call.1} parent=0
    _
  %s10 = ssub.s32 1, %s8
  %s11 = scalar_select 0, %s10, %s8
  %12 = sst [smem:[#allocation2]] %s6
  $region1: #{tpu_custom_call.1} parent=0
    #allocation3 [shape = 'u8[512]{0}', space=vmem, size = 0x400, scoped, tag = 'output window, operand 0, single buffered']
    #allocation4 [shape = 's32[1]{0}', space=sflag, size = 0x4, scoped, tag = 'scoped memory for tpu_custom_call.1']
    %13 = vsyncpa [#allocation4], 0
    // Predicated region
    $region2: #{tpu_custom_call.1} parent=1 // pred_check
      _
    $region3: #{tpu_custom_call.1} parent=1 // pred_check_branch
      %15 = sbr.rel (0) target = $region5
    $region4: #{tpu_custom_call.1} parent=1 // pred_region
      _
    $region5: #{tpu_custom_call.1} parent=1 // pred_fallthru
      _
    // Predicated region
    $region6: #{tpu_custom_call.1} parent=1 // pred_check
      _
    $region7: #{tpu_custom_call.1} parent=1 // pred_check_branch
      %17 = sbr.rel (0) target = $region9
    $region8: #{tpu_custom_call.1} parent=1 // pred_region
      _
    $region9: #{tpu_custom_call.1} parent=1 // pred_fallthru
      _
    // Predicated region
    $region10: #{tpu_custom_call.1} parent=1 // pred_check
      _
    $region11: #{tpu_custom_call.1} parent=1 // pred_check_branch
      %19 = sbr.rel (0) target = $region13
    $region12: #{tpu_custom_call.1} parent=1 // pred_region
      _
    $region13: #{tpu_custom_call.1} parent=1 // pred_fallthru
      _
    // Predicated region
    $region14: #{tpu_custom_call.1} parent=1 // pred_check
      _
    $region15: #{tpu_custom_call.1} parent=1 // pred_check_branch
      %21 = sbr.rel (0) target = $region17
    $region16: #{tpu_custom_call.1} parent=1 // pred_region
      _
    $region17: #{tpu_custom_call.1} parent=1 // pred_fallthru
      _
    // Predicated region
    $region18: #{tpu_custom_call.1} parent=1 // pred_check
      _
    $region19: #{tpu_custom_call.1} parent=1 // pred_check_branch
      %23 = sbr.rel (0) target = $region21
    $region20: #{tpu_custom_call.1} parent=1 // pred_region
      _
    $region21: #{tpu_custom_call.1} parent=1 // pred_fallthru
      _
    // Predicated region
    $region22: #{tpu_custom_call.1} parent=1 // pred_check
      _
    $region23: #{tpu_custom_call.1} parent=1 // pred_check_branch
      %25 = sbr.rel (0) target = $region25
    $region24: #{tpu_custom_call.1} parent=1 // pred_region
      _
    $region25: #{tpu_custom_call.1} parent=1 // pred_fallthru
      _
    // Predicated region
    $region26: #{tpu_custom_call.1} parent=1 // pred_check
      _
    $region27: #{tpu_custom_call.1} parent=1 // pred_check_branch
      %27 = sbr.rel (0) target = $region29
    $region28: #{tpu_custom_call.1} parent=1 // pred_region
      _
    $region29: #{tpu_custom_call.1} parent=1 // pred_fallthru
      _
    %v29 = vld [vmem:[%s0] sm:$0x3]
    %v30 = vld [vmem:[%s1] sm:$0xff]
    %v31 = vld [vmem:[%s1 + $0x8] sm:$0xff]
    %v32 = vld [vmem:[%s1 + $0x10] sm:$0xff]
    %v33 = vld [vmem:[%s1 + $0x18] sm:$0xff]
    %v34 = vld [vmem:[%s1 + $0x20] sm:$0xff]
    %v35 = vld [vmem:[%s1 + $0x28] sm:$0xff]
    %v36 = vld [vmem:[%s1 + $0x30] sm:$0xff]
    %v37 = vld [vmem:[%s1 + $0x38] sm:$0xff]
    %v38 = vld [vmem:[%s1 + $0x40] sm:$0xff]
    %v39 = vld [vmem:[%s1 + $0x48] sm:$0xff]
    %v40 = vld [vmem:[%s1 + $0x50] sm:$0xff]
    %v41 = vld [vmem:[%s1 + $0x58] sm:$0xff]
    %v42 = vld [vmem:[%s1 + $0x60] sm:$0xff]
    %v43 = vld [vmem:[%s1 + $0x68] sm:$0xff]
    %v44 = vld [vmem:[%s1 + $0x70] sm:$0xff]
    %v45 = vld [vmem:[%s1 + $0x78] sm:$0xff]
    %47 = vset.pattern.permute.xlu0 0
    %48 = vperm.xlu0 %47, %v30
    %v49 = vpop.permute.xlu0 %48
    %52 = vset.pattern.permute.xlu0 0
    %53 = vperm.xlu0 %52, %v31
    %v54 = vpop.permute.xlu0 %53
    %57 = vset.pattern.permute.xlu0 0
    %58 = vperm.xlu0 %57, %v32
    %v59 = vpop.permute.xlu0 %58
    %62 = vset.pattern.permute.xlu0 0
    %63 = vperm.xlu0 %62, %v33
    %v64 = vpop.permute.xlu0 %63
    %67 = vset.pattern.permute.xlu0 0
    %68 = vperm.xlu0 %67, %v34
    %v69 = vpop.permute.xlu0 %68
    %72 = vset.pattern.permute.xlu0 0
    %73 = vperm.xlu0 %72, %v35
    %v74 = vpop.permute.xlu0 %73
    %77 = vset.pattern.permute.xlu0 0
    %78 = vperm.xlu0 %77, %v36
    %v79 = vpop.permute.xlu0 %78
    %82 = vset.pattern.permute.xlu0 0
    %83 = vperm.xlu0 %82, %v37
    %v84 = vpop.permute.xlu0 %83
    %87 = vset.pattern.permute.xlu0 0
    %88 = vperm.xlu0 %87, %v38
    %v89 = vpop.permute.xlu0 %88
    %92 = vset.pattern.permute.xlu0 0
    %93 = vperm.xlu0 %92, %v39
    %v94 = vpop.permute.xlu0 %93
    %97 = vset.pattern.permute.xlu0 0
    %98 = vperm.xlu0 %97, %v40
    %v99 = vpop.permute.xlu0 %98
    %102 = vset.pattern.permute.xlu0 0
    %103 = vperm.xlu0 %102, %v41
    %v104 = vpop.permute.xlu0 %103
    %107 = vset.pattern.permute.xlu0 0
    %108 = vperm.xlu0 %107, %v42
    %v109 = vpop.permute.xlu0 %108
    %112 = vset.pattern.permute.xlu0 0
    %113 = vperm.xlu0 %112, %v43
    %v114 = vpop.permute.xlu0 %113
    %117 = vset.pattern.permute.xlu0 0
    %118 = vperm.xlu0 %117, %v44
    %v119 = vpop.permute.xlu0 %118
    %122 = vset.pattern.permute.xlu0 0
    %123 = vperm.xlu0 %122, %v45
    %v124 = vpop.permute.xlu0 %123
    %v126 = vlaneseq
    %v127 = vshrl.u32 %v126, 7
    %v128 = vsub.s32 0, %v127
    %v129 = vrot.slane %v29, %v128
    %v130 = vmul.f32 %v49, %v129
    %v131 = vmul.f32 %v54, %v129
    %v132 = vmul.f32 %v59, %v129
    %v133 = vmul.f32 %v64, %v129
    %v134 = vmul.f32 %v69, %v129
    %v135 = vmul.f32 %v74, %v129
    %v136 = vmul.f32 %v79, %v129
    %v137 = vmul.f32 %v84, %v129
    %v138 = vmul.f32 %v89, %v129
    %v139 = vmul.f32 %v94, %v129
    %v140 = vmul.f32 %v99, %v129
    %v141 = vmul.f32 %v104, %v129
    %v142 = vmul.f32 %v109, %v129
    %v143 = vmul.f32 %v114, %v129
    %v144 = vmul.f32 %v119, %v129
    %v145 = vmul.f32 %v124, %v129
    %146 = vset.pattern.permute.xlu0 1
    %147 = vperm.xlu0 %146, %v30
    %v148 = vpop.permute.xlu0 %147
    %150 = vset.pattern.permute.xlu0 1
    %151 = vperm.xlu0 %150, %v31
    %v152 = vpop.permute.xlu0 %151
    %154 = vset.pattern.permute.xlu0 1
    %155 = vperm.xlu0 %154, %v32
    %v156 = vpop.permute.xlu0 %155
    %158 = vset.pattern.permute.xlu0 1
    %159 = vperm.xlu0 %158, %v33
    %v160 = vpop.permute.xlu0 %159
    %162 = vset.pattern.permute.xlu0 1
    %163 = vperm.xlu0 %162, %v34
    %v164 = vpop.permute.xlu0 %163
    %166 = vset.pattern.permute.xlu0 1
    %167 = vperm.xlu0 %166, %v35
    %v168 = vpop.permute.xlu0 %167
    %170 = vset.pattern.permute.xlu0 1
    %171 = vperm.xlu0 %170, %v36
    %v172 = vpop.permute.xlu0 %171
    %174 = vset.pattern.permute.xlu0 1
    %175 = vperm.xlu0 %174, %v37
    %v176 = vpop.permute.xlu0 %175
    %178 = vset.pattern.permute.xlu0 1
    %179 = vperm.xlu0 %178, %v38
    %v180 = vpop.permute.xlu0 %179
    %182 = vset.pattern.permute.xlu0 1
    %183 = vperm.xlu0 %182, %v39
    %v184 = vpop.permute.xlu0 %183
    %186 = vset.pattern.permute.xlu0 1
    %187 = vperm.xlu0 %186, %v40
    %v188 = vpop.permute.xlu0 %187
    %190 = vset.pattern.permute.xlu0 1
    %191 = vperm.xlu0 %190, %v41
    %v192 = vpop.permute.xlu0 %191
    %194 = vset.pattern.permute.xlu0 1
    %195 = vperm.xlu0 %194, %v42
    %v196 = vpop.permute.xlu0 %195
    %198 = vset.pattern.permute.xlu0 1
    %199 = vperm.xlu0 %198, %v43
    %v200 = vpop.permute.xlu0 %199
    %202 = vset.pattern.permute.xlu0 1
    %203 = vperm.xlu0 %202, %v44
    %v204 = vpop.permute.xlu0 %203
    %206 = vset.pattern.permute.xlu0 1
    %207 = vperm.xlu0 %206, %v45
    %v208 = vpop.permute.xlu0 %207
    %v210 = vlaneseq
    %v211 = vshrl.u32 %v210, 7
    %v212 = vsub.s32 1, %v211
    %v213 = vrot.slane %v29, %v212
    %v214 = vmul.f32 %v148, %v213
    %v215 = vmul.f32 %v152, %v213
    %v216 = vmul.f32 %v156, %v213
    %v217 = vmul.f32 %v160, %v213
    %v218 = vmul.f32 %v164, %v213
    %v219 = vmul.f32 %v168, %v213
    %v220 = vmul.f32 %v172, %v213
    %v221 = vmul.f32 %v176, %v213
    %v222 = vmul.f32 %v180, %v213
    %v223 = vmul.f32 %v184, %v213
    %v224 = vmul.f32 %v188, %v213
    %v225 = vmul.f32 %v192, %v213
    %v226 = vmul.f32 %v196, %v213
    %v227 = vmul.f32 %v200, %v213
    %v228 = vmul.f32 %v204, %v213
    %v229 = vmul.f32 %v208, %v213
    %v230 = vadd.f32 %v130, %v214
    %v231 = vadd.f32 %v131, %v215
    %v232 = vadd.f32 %v132, %v216
    %v233 = vadd.f32 %v133, %v217
    %v234 = vadd.f32 %v134, %v218
    %v235 = vadd.f32 %v135, %v219
    %v236 = vadd.f32 %v136, %v220
    %v237 = vadd.f32 %v137, %v221
    %v238 = vadd.f32 %v138, %v222
    %v239 = vadd.f32 %v139, %v223
    %v240 = vadd.f32 %v140, %v224
    %v241 = vadd.f32 %v141, %v225
    %v242 = vadd.f32 %v142, %v226
    %v243 = vadd.f32 %v143, %v227
    %v244 = vadd.f32 %v144, %v228
    %v245 = vadd.f32 %v145, %v229
    %v246 = vld [vmem:[%s2] sm:$0xff]
    %v247 = vld [vmem:[%s2 + $0x8] sm:$0xff]
    %v248 = vld [vmem:[%s2 + $0x10] sm:$0xff]
    %v249 = vld [vmem:[%s2 + $0x18] sm:$0xff]
    %v250 = vld [vmem:[%s2 + $0x20] sm:$0xff]
    %v251 = vld [vmem:[%s2 + $0x28] sm:$0xff]
    %v252 = vld [vmem:[%s2 + $0x30] sm:$0xff]
    %v253 = vld [vmem:[%s2 + $0x38] sm:$0xff]
    %v254 = vld [vmem:[%s2 + $0x40] sm:$0xff]
    %v255 = vld [vmem:[%s2 + $0x48] sm:$0xff]
    %v256 = vld [vmem:[%s2 + $0x50] sm:$0xff]
    %v257 = vld [vmem:[%s2 + $0x58] sm:$0xff]
    %v258 = vld [vmem:[%s2 + $0x60] sm:$0xff]
    %v259 = vld [vmem:[%s2 + $0x68] sm:$0xff]
    %v260 = vld [vmem:[%s2 + $0x70] sm:$0xff]
    %v261 = vld [vmem:[%s2 + $0x78] sm:$0xff]
    %263 = vset.pattern.permute.xlu0 0
    %264 = vperm.xlu0 %263, %v246
    %v265 = vpop.permute.xlu0 %264
    %268 = vset.pattern.permute.xlu0 0
    %269 = vperm.xlu0 %268, %v247
    %v270 = vpop.permute.xlu0 %269
    %273 = vset.pattern.permute.xlu0 0
    %274 = vperm.xlu0 %273, %v248
    %v275 = vpop.permute.xlu0 %274
    %278 = vset.pattern.permute.xlu0 0
    %279 = vperm.xlu0 %278, %v249
    %v280 = vpop.permute.xlu0 %279
    %283 = vset.pattern.permute.xlu0 0
    %284 = vperm.xlu0 %283, %v250
    %v285 = vpop.permute.xlu0 %284
    %288 = vset.pattern.permute.xlu0 0
    %289 = vperm.xlu0 %288, %v251
    %v290 = vpop.permute.xlu0 %289
    %293 = vset.pattern.permute.xlu0 0
    %294 = vperm.xlu0 %293, %v252
    %v295 = vpop.permute.xlu0 %294
    %298 = vset.pattern.permute.xlu0 0
    %299 = vperm.xlu0 %298, %v253
    %v300 = vpop.permute.xlu0 %299
    %303 = vset.pattern.permute.xlu0 0
    %304 = vperm.xlu0 %303, %v254
    %v305 = vpop.permute.xlu0 %304
    %308 = vset.pattern.permute.xlu0 0
    %309 = vperm.xlu0 %308, %v255
    %v310 = vpop.permute.xlu0 %309
    %313 = vset.pattern.permute.xlu0 0
    %314 = vperm.xlu0 %313, %v256
    %v315 = vpop.permute.xlu0 %314
    %318 = vset.pattern.permute.xlu0 0
    %319 = vperm.xlu0 %318, %v257
    %v320 = vpop.permute.xlu0 %319
    %323 = vset.pattern.permute.xlu0 0
    %324 = vperm.xlu0 %323, %v258
    %v325 = vpop.permute.xlu0 %324
    %328 = vset.pattern.permute.xlu0 0
    %329 = vperm.xlu0 %328, %v259
    %v330 = vpop.permute.xlu0 %329
    %333 = vset.pattern.permute.xlu0 0
    %334 = vperm.xlu0 %333, %v260
    %v335 = vpop.permute.xlu0 %334
    %338 = vset.pattern.permute.xlu0 0
    %339 = vperm.xlu0 %338, %v261
    %v340 = vpop.permute.xlu0 %339
    %v342 = vadd.f32 %v230, %v265
    %v343 = vadd.f32 %v231, %v270
    %v344 = vadd.f32 %v232, %v275
    %v345 = vadd.f32 %v233, %v280
    %v346 = vadd.f32 %v234, %v285
    %v347 = vadd.f32 %v235, %v290
    %v348 = vadd.f32 %v236, %v295
    %v349 = vadd.f32 %v237, %v300
    %v350 = vadd.f32 %v238, %v305
    %v351 = vadd.f32 %v239, %v310
    %v352 = vadd.f32 %v240, %v315
    %v353 = vadd.f32 %v241, %v320
    %v354 = vadd.f32 %v242, %v325
    %v355 = vadd.f32 %v243, %v330
    %v356 = vadd.f32 %v244, %v335
    %v357 = vadd.f32 %v245, %v340
    %v358 = vmul.f32 %v342, 0.5
    %v359 = vmul.f32 %v343, 0.5
    %v360 = vmul.f32 %v344, 0.5
    %v361 = vmul.f32 %v345, 0.5
    %v362 = vmul.f32 %v346, 0.5
    %v363 = vmul.f32 %v347, 0.5
    %v364 = vmul.f32 %v348, 0.5
    %v365 = vmul.f32 %v349, 0.5
    %v366 = vmul.f32 %v350, 0.5
    %v367 = vmul.f32 %v351, 0.5
    %v368 = vmul.f32 %v352, 0.5
    %v369 = vmul.f32 %v353, 0.5
    %v370 = vmul.f32 %v354, 0.5
    %v371 = vmul.f32 %v355, 0.5
    %v372 = vmul.f32 %v356, 0.5
    %v373 = vmul.f32 %v357, 0.5
    %v374 = vtanh.pop %v358
    %v375 = vtanh.pop %v359
    %v376 = vtanh.pop %v360
    %v377 = vtanh.pop %v361
    %v378 = vtanh.pop %v362
    %v379 = vtanh.pop %v363
    %v380 = vtanh.pop %v364
    %v381 = vtanh.pop %v365
    %v382 = vtanh.pop %v366
    %v383 = vtanh.pop %v367
    %v384 = vtanh.pop %v368
    %v385 = vtanh.pop %v369
    %v386 = vtanh.pop %v370
    %v387 = vtanh.pop %v371
    %v388 = vtanh.pop %v372
    %v389 = vtanh.pop %v373
    %v390 = vmul.f32 %v374, 0.5
    %v391 = vmul.f32 %v375, 0.5
    %v392 = vmul.f32 %v376, 0.5
    %v393 = vmul.f32 %v377, 0.5
    %v394 = vmul.f32 %v378, 0.5
    %v395 = vmul.f32 %v379, 0.5
    %v396 = vmul.f32 %v380, 0.5
    %v397 = vmul.f32 %v381, 0.5
    %v398 = vmul.f32 %v382, 0.5
    %v399 = vmul.f32 %v383, 0.5
    %v400 = vmul.f32 %v384, 0.5
    %v401 = vmul.f32 %v385, 0.5
    %v402 = vmul.f32 %v386, 0.5
    %v403 = vmul.f32 %v387, 0.5
    %v404 = vmul.f32 %v388, 0.5
    %v405 = vmul.f32 %v389, 0.5
    %v406 = vadd.f32 %v390, 0.5
    %v407 = vadd.f32 %v391, 0.5
    %v408 = vadd.f32 %v392, 0.5
    %v409 = vadd.f32 %v393, 0.5
    %v410 = vadd.f32 %v394, 0.5
    %v411 = vadd.f32 %v395, 0.5
    %v412 = vadd.f32 %v396, 0.5
    %v413 = vadd.f32 %v397, 0.5
    %v414 = vadd.f32 %v398, 0.5
    %v415 = vadd.f32 %v399, 0.5
    %v416 = vadd.f32 %v400, 0.5
    %v417 = vadd.f32 %v401, 0.5
    %v418 = vadd.f32 %v402, 0.5
    %v419 = vadd.f32 %v403, 0.5
    %v420 = vadd.f32 %v404, 0.5
    %v421 = vadd.f32 %v405, 0.5
    %v422 = vld [vmem:[%s3] sm:$0xf]
    %v423 = vld [vmem:[%s3 + $0x4] sm:$0xf]
    %v424 = vld [vmem:[%s3 + $0x8] sm:$0xf]
    %v425 = vld [vmem:[%s3 + $0xc] sm:$0xf]
    %v426 = vld [vmem:[%s3 + $0x10] sm:$0xf]
    %v427 = vld [vmem:[%s3 + $0x14] sm:$0xf]
    %v428 = vld [vmem:[%s3 + $0x18] sm:$0xf]
    %v429 = vld [vmem:[%s3 + $0x1c] sm:$0xf]
    %v430 = vld [vmem:[%s3 + $0x20] sm:$0xf]
    %v431 = vld [vmem:[%s3 + $0x24] sm:$0xf]
    %v432 = vld [vmem:[%s3 + $0x28] sm:$0xf]
    %v433 = vld [vmem:[%s3 + $0x2c] sm:$0xf]
    %v434 = vld [vmem:[%s3 + $0x30] sm:$0xf]
    %v435 = vld [vmem:[%s3 + $0x34] sm:$0xf]
    %v436 = vld [vmem:[%s3 + $0x38] sm:$0xf]
    %v437 = vld [vmem:[%s3 + $0x3c] sm:$0xf]
    %v438 = vpack.c.bf16 %v407, %v406
    %v439 = vpack.c.bf16 %v409, %v408
    %v440 = vpack.c.bf16 %v411, %v410
    %v441 = vpack.c.bf16 %v413, %v412
    %v442 = vpack.c.bf16 %v415, %v414
    %v443 = vpack.c.bf16 %v417, %v416
    %v444 = vpack.c.bf16 %v419, %v418
    %v445 = vpack.c.bf16 %v421, %v420
    %v446 = vld [vmem:[%s4] sm:$0xff]
    %v447 = vld [vmem:[%s4 + $0x8] sm:$0xff]
    %v448 = vld [vmem:[%s4 + $0x10] sm:$0xff]
    %v449 = vld [vmem:[%s4 + $0x18] sm:$0xff]
    %v450 = vld [vmem:[%s4 + $0x20] sm:$0xff]
    %v451 = vld [vmem:[%s4 + $0x28] sm:$0xff]
    %v452 = vld [vmem:[%s4 + $0x30] sm:$0xff]
    %v453 = vld [vmem:[%s4 + $0x38] sm:$0xff]
    %v454 = vld [vmem:[%s4 + $0x40] sm:$0xff]
    %v455 = vld [vmem:[%s4 + $0x48] sm:$0xff]
    %v456 = vld [vmem:[%s4 + $0x50] sm:$0xff]
    %v457 = vld [vmem:[%s4 + $0x58] sm:$0xff]
    %v458 = vld [vmem:[%s4 + $0x60] sm:$0xff]
    %v459 = vld [vmem:[%s4 + $0x68] sm:$0xff]
    %v460 = vld [vmem:[%s4 + $0x70] sm:$0xff]
    %v461 = vld [vmem:[%s4 + $0x78] sm:$0xff]
    %463 = vset.pattern.permute.xlu0 0
    %464 = vperm.xlu0 %463, %v446
    %v465 = vpop.permute.xlu0 %464
    %468 = vset.pattern.permute.xlu0 0
    %469 = vperm.xlu0 %468, %v447
    %v470 = vpop.permute.xlu0 %469
    %473 = vset.pattern.permute.xlu0 0
    %474 = vperm.xlu0 %473, %v448
    %v475 = vpop.permute.xlu0 %474
    %478 = vset.pattern.permute.xlu0 0
    %479 = vperm.xlu0 %478, %v449
    %v480 = vpop.permute.xlu0 %479
    %483 = vset.pattern.permute.xlu0 0
    %484 = vperm.xlu0 %483, %v450
    %v485 = vpop.permute.xlu0 %484
    %488 = vset.pattern.permute.xlu0 0
    %489 = vperm.xlu0 %488, %v451
    %v490 = vpop.permute.xlu0 %489
    %493 = vset.pattern.permute.xlu0 0
    %494 = vperm.xlu0 %493, %v452
    %v495 = vpop.permute.xlu0 %494
    %498 = vset.pattern.permute.xlu0 0
    %499 = vperm.xlu0 %498, %v453
    %v500 = vpop.permute.xlu0 %499
    %503 = vset.pattern.permute.xlu0 0
    %504 = vperm.xlu0 %503, %v454
    %v505 = vpop.permute.xlu0 %504
    %508 = vset.pattern.permute.xlu0 0
    %509 = vperm.xlu0 %508, %v455
    %v510 = vpop.permute.xlu0 %509
    %513 = vset.pattern.permute.xlu0 0
    %514 = vperm.xlu0 %513, %v456
    %v515 = vpop.permute.xlu0 %514
    %518 = vset.pattern.permute.xlu0 0
    %519 = vperm.xlu0 %518, %v457
    %v520 = vpop.permute.xlu0 %519
    %523 = vset.pattern.permute.xlu0 0
    %524 = vperm.xlu0 %523, %v458
    %v525 = vpop.permute.xlu0 %524
    %528 = vset.pattern.permute.xlu0 0
    %529 = vperm.xlu0 %528, %v459
    %v530 = vpop.permute.xlu0 %529
    %533 = vset.pattern.permute.xlu0 0
    %534 = vperm.xlu0 %533, %v460
    %v535 = vpop.permute.xlu0 %534
    %538 = vset.pattern.permute.xlu0 0
    %539 = vperm.xlu0 %538, %v461
    %v540 = vpop.permute.xlu0 %539
    %v558 = vunpack.c.l.b16 %v422
    %v559 = vunpack.c.l.b16 %v423
    %v560 = vunpack.c.l.b16 %v424
    %v561 = vunpack.c.l.b16 %v425
    %v562 = vunpack.c.l.b16 %v426
    %v563 = vunpack.c.l.b16 %v427
    %v564 = vunpack.c.l.b16 %v428
    %v565 = vunpack.c.l.b16 %v429
    %v566 = vunpack.c.l.b16 %v430
    %v567 = vunpack.c.l.b16 %v431
    %v568 = vunpack.c.l.b16 %v432
    %v569 = vunpack.c.l.b16 %v433
    %v570 = vunpack.c.l.b16 %v434
    %v571 = vunpack.c.l.b16 %v435
    %v572 = vunpack.c.l.b16 %v436
    %v573 = vunpack.c.l.b16 %v437
    %v574 = vpack.c.b16 %v559, %v558
    %v575 = vpack.c.b16 %v561, %v560
    %v576 = vpack.c.b16 %v563, %v562
    %v577 = vpack.c.b16 %v565, %v564
    %v578 = vpack.c.b16 %v567, %v566
    %v579 = vpack.c.b16 %v569, %v568
    %v580 = vpack.c.b16 %v571, %v570
    %v581 = vpack.c.b16 %v573, %v572
    %590 = vmatprep.subr.bf16.mxu0 0
    %591 = vmatpush1.bf16.msra.mxu0 %v438
    %592 = vmatprep.subr.bf16.mxu0 0
    %593 = vmatpush1.bf16.msra.mxu0 %v439
    %594 = vmatprep.subr.bf16.mxu0 0
    %595 = vmatpush1.bf16.msra.mxu0 %v440
    %596 = vmatprep.subr.bf16.mxu0 0
    %597 = vmatpush1.bf16.msra.mxu0 %v441
    %598 = vmatprep.subr.bf16.mxu0 0
    %599 = vmatpush1.bf16.msra.mxu0 %v442
    %600 = vmatprep.subr.bf16.mxu0 0
    %601 = vmatpush1.bf16.msra.mxu0 %v443
    %602 = vmatprep.subr.bf16.mxu0 0
    %603 = vmatpush1.bf16.msra.mxu0 %v444
    %604 = vmatprep.subr.bf16.mxu0 0
    %605 = vmatpush1.bf16.msra.mxu0 %v445
    %606 = vmatprep.subr.bf16.mxu0 0
    %607 = vmatpush1.bf16.msra.mxu0 0
    %608 = vmatprep.subr.bf16.mxu0 0
    %609 = vmatpush1.bf16.msra.mxu0 0
    %610 = vmatprep.subr.bf16.mxu0 0
    %611 = vmatpush1.bf16.msra.mxu0 0
    %612 = vmatprep.subr.bf16.mxu0 0
    %613 = vmatpush1.bf16.msra.mxu0 0
    %614 = vmatprep.subr.bf16.mxu0 0
    %615 = vmatpush1.bf16.msra.mxu0 0
    %616 = vmatprep.subr.bf16.mxu0 0
    %617 = vmatpush1.bf16.msra.mxu0 0
    %618 = vmatprep.subr.bf16.mxu0 0
    %619 = vmatpush1.bf16.msra.mxu0 0
    %620 = vmatprep.subr.bf16.mxu0 0
    %621 = vmatpush1.bf16.msra.mxu0 0
    %622 = vmatprep.mubr.bf16.mxu0 0
    %623 = vmatmul.mubr.bf16.gmra.mrb[0].mxu0 %v574
    %v624 = vpop.f32.mrb[0].mxu0
    %v625 = vadd.f32 %v465, %v624
    %v626 = vpop.f32.mrb[0].mxu0
    %v627 = vpop.f32.mrb[0].mxu0
    %v628 = vadd.f32 %v470, %v627
    %v629 = vpop.f32.mrb[0].mxu0
    %630 = vmatprep.mubr.bf16.mxu0 0
    %631 = vmatmul.mubr.bf16.gmra.mrb[0].mxu0 %v575
    %v632 = vpop.f32.mrb[0].mxu0
    %v633 = vadd.f32 %v475, %v632
    %v634 = vpop.f32.mrb[0].mxu0
    %v635 = vpop.f32.mrb[0].mxu0
    %v636 = vadd.f32 %v480, %v635
    %v637 = vpop.f32.mrb[0].mxu0
    %638 = vmatprep.mubr.bf16.mxu0 0
    %639 = vmatmul.mubr.bf16.gmra.mrb[0].mxu0 %v576
    %v640 = vpop.f32.mrb[0].mxu0
    %v641 = vadd.f32 %v485, %v640
    %v642 = vpop.f32.mrb[0].mxu0
    %v643 = vpop.f32.mrb[0].mxu0
    %v644 = vadd.f32 %v490, %v643
    %v645 = vpop.f32.mrb[0].mxu0
    %646 = vmatprep.mubr.bf16.mxu0 0
    %647 = vmatmul.mubr.bf16.gmra.mrb[0].mxu0 %v577
    %v648 = vpop.f32.mrb[0].mxu0
    %v649 = vadd.f32 %v495, %v648
    %v650 = vpop.f32.mrb[0].mxu0
    %v651 = vpop.f32.mrb[0].mxu0
    %v652 = vadd.f32 %v500, %v651
    %v653 = vpop.f32.mrb[0].mxu0
    %654 = vmatprep.mubr.bf16.mxu0 0
    %655 = vmatmul.mubr.bf16.gmra.mrb[0].mxu0 %v578
    %v656 = vpop.f32.mrb[0].mxu0
    %v657 = vadd.f32 %v505, %v656
    %v658 = vpop.f32.mrb[0].mxu0
    %v659 = vpop.f32.mrb[0].mxu0
    %v660 = vadd.f32 %v510, %v659
    %v661 = vpop.f32.mrb[0].mxu0
    %662 = vmatprep.mubr.bf16.mxu0 0
    %663 = vmatmul.mubr.bf16.gmra.mrb[0].mxu0 %v579
    %v664 = vpop.f32.mrb[0].mxu0
    %v665 = vadd.f32 %v515, %v664
    %v666 = vpop.f32.mrb[0].mxu0
    %v667 = vpop.f32.mrb[0].mxu0
    %v668 = vadd.f32 %v520, %v667
    %v669 = vpop.f32.mrb[0].mxu0
    %670 = vmatprep.mubr.bf16.mxu0 0
    %671 = vmatmul.mubr.bf16.gmra.mrb[0].mxu0 %v580
    %v672 = vpop.f32.mrb[0].mxu0
    %v673 = vadd.f32 %v525, %v672
    %v674 = vpop.f32.mrb[0].mxu0
    %v675 = vpop.f32.mrb[0].mxu0
    %v676 = vadd.f32 %v530, %v675
    %v677 = vpop.f32.mrb[0].mxu0
    %678 = vmatprep.mubr.bf16.mxu0 0
    %679 = vmatmul.mubr.bf16.gmra.mrb[0].mxu0 %v581
    %v680 = vpop.f32.mrb[0].mxu0
    %v681 = vadd.f32 %v535, %v680
    %v682 = vpop.f32.mrb[0].mxu0
    %v683 = vpop.f32.mrb[0].mxu0
    %v684 = vadd.f32 %v540, %v683
    %v685 = vpop.f32.mrb[0].mxu0
    %686 = vdwg.mxu0
    %v687 = vmul.f32 %v625, 0.5
    %v688 = vmul.f32 %v628, 0.5
    %v689 = vmul.f32 %v633, 0.5
    %v690 = vmul.f32 %v636, 0.5
    %v691 = vmul.f32 %v641, 0.5
    %v692 = vmul.f32 %v644, 0.5
    %v693 = vmul.f32 %v649, 0.5
    %v694 = vmul.f32 %v652, 0.5
    %v695 = vmul.f32 %v657, 0.5
    %v696 = vmul.f32 %v660, 0.5
    %v697 = vmul.f32 %v665, 0.5
    %v698 = vmul.f32 %v668, 0.5
    %v699 = vmul.f32 %v673, 0.5
    %v700 = vmul.f32 %v676, 0.5
    %v701 = vmul.f32 %v681, 0.5
    %v702 = vmul.f32 %v684, 0.5
    %v703 = vtanh.pop %v687
    %v704 = vtanh.pop %v688
    %v705 = vtanh.pop %v689
    %v706 = vtanh.pop %v690
    %v707 = vtanh.pop %v691
    %v708 = vtanh.pop %v692
    %v709 = vtanh.pop %v693
    %v710 = vtanh.pop %v694
    %v711 = vtanh.pop %v695
    %v712 = vtanh.pop %v696
    %v713 = vtanh.pop %v697
    %v714 = vtanh.pop %v698
    %v715 = vtanh.pop %v699
    %v716 = vtanh.pop %v700
    %v717 = vtanh.pop %v701
    %v718 = vtanh.pop %v702
    %v719 = vmul.f32 %v703, 0.5
    %v720 = vmul.f32 %v704, 0.5
    %v721 = vmul.f32 %v705, 0.5
    %v722 = vmul.f32 %v706, 0.5
    %v723 = vmul.f32 %v707, 0.5
    %v724 = vmul.f32 %v708, 0.5
    %v725 = vmul.f32 %v709, 0.5
    %v726 = vmul.f32 %v710, 0.5
    %v727 = vmul.f32 %v711, 0.5
    %v728 = vmul.f32 %v712, 0.5
    %v729 = vmul.f32 %v713, 0.5
    %v730 = vmul.f32 %v714, 0.5
    %v731 = vmul.f32 %v715, 0.5
    %v732 = vmul.f32 %v716, 0.5
    %v733 = vmul.f32 %v717, 0.5
    %v734 = vmul.f32 %v718, 0.5
    %v735 = vadd.f32 %v719, 0.5
    %v736 = vadd.f32 %v720, 0.5
    %v737 = vadd.f32 %v721, 0.5
    %v738 = vadd.f32 %v722, 0.5
    %v739 = vadd.f32 %v723, 0.5
    %v740 = vadd.f32 %v724, 0.5
    %v741 = vadd.f32 %v725, 0.5
    %v742 = vadd.f32 %v726, 0.5
    %v743 = vadd.f32 %v727, 0.5
    %v744 = vadd.f32 %v728, 0.5
    %v745 = vadd.f32 %v729, 0.5
    %v746 = vadd.f32 %v730, 0.5
    %v747 = vadd.f32 %v731, 0.5
    %v748 = vadd.f32 %v732, 0.5
    %v749 = vadd.f32 %v733, 0.5
    %v750 = vadd.f32 %v734, 0.5
    %v751 = vld [vmem:[%s5] sm:$0xff]
    %v752 = vld [vmem:[%s5 + $0x8] sm:$0xff]
    %v753 = vld [vmem:[%s5 + $0x10] sm:$0xff]
    %v754 = vld [vmem:[%s5 + $0x18] sm:$0xff]
    %v755 = vld [vmem:[%s5 + $0x20] sm:$0xff]
    %v756 = vld [vmem:[%s5 + $0x28] sm:$0xff]
    %v757 = vld [vmem:[%s5 + $0x30] sm:$0xff]
    %v758 = vld [vmem:[%s5 + $0x38] sm:$0xff]
    %v759 = vld [vmem:[%s5 + $0x40] sm:$0xff]
    %v760 = vld [vmem:[%s5 + $0x48] sm:$0xff]
    %v761 = vld [vmem:[%s5 + $0x50] sm:$0xff]
    %v762 = vld [vmem:[%s5 + $0x58] sm:$0xff]
    %v763 = vld [vmem:[%s5 + $0x60] sm:$0xff]
    %v764 = vld [vmem:[%s5 + $0x68] sm:$0xff]
    %v765 = vld [vmem:[%s5 + $0x70] sm:$0xff]
    %v766 = vld [vmem:[%s5 + $0x78] sm:$0xff]
    %768 = vset.pattern.permute.xlu0 0
    %769 = vperm.xlu0 %768, %v751
    %v770 = vpop.permute.xlu0 %769
    %773 = vset.pattern.permute.xlu0 0
    %774 = vperm.xlu0 %773, %v752
    %v775 = vpop.permute.xlu0 %774
    %778 = vset.pattern.permute.xlu0 0
    %779 = vperm.xlu0 %778, %v753
    %v780 = vpop.permute.xlu0 %779
    %783 = vset.pattern.permute.xlu0 0
    %784 = vperm.xlu0 %783, %v754
    %v785 = vpop.permute.xlu0 %784
    %788 = vset.pattern.permute.xlu0 0
    %789 = vperm.xlu0 %788, %v755
    %v790 = vpop.permute.xlu0 %789
    %793 = vset.pattern.permute.xlu0 0
    %794 = vperm.xlu0 %793, %v756
    %v795 = vpop.permute.xlu0 %794
    %798 = vset.pattern.permute.xlu0 0
    %799 = vperm.xlu0 %798, %v757
    %v800 = vpop.permute.xlu0 %799
    %803 = vset.pattern.permute.xlu0 0
    %804 = vperm.xlu0 %803, %v758
    %v805 = vpop.permute.xlu0 %804
    %808 = vset.pattern.permute.xlu0 0
    %809 = vperm.xlu0 %808, %v759
    %v810 = vpop.permute.xlu0 %809
    %813 = vset.pattern.permute.xlu0 0
    %814 = vperm.xlu0 %813, %v760
    %v815 = vpop.permute.xlu0 %814
    %818 = vset.pattern.permute.xlu0 0
    %819 = vperm.xlu0 %818, %v761
    %v820 = vpop.permute.xlu0 %819
    %823 = vset.pattern.permute.xlu0 0
    %824 = vperm.xlu0 %823, %v762
    %v825 = vpop.permute.xlu0 %824
    %828 = vset.pattern.permute.xlu0 0
    %829 = vperm.xlu0 %828, %v763
    %v830 = vpop.permute.xlu0 %829
    %833 = vset.pattern.permute.xlu0 0
    %834 = vperm.xlu0 %833, %v764
    %v835 = vpop.permute.xlu0 %834
    %838 = vset.pattern.permute.xlu0 0
    %839 = vperm.xlu0 %838, %v765
    %v840 = vpop.permute.xlu0 %839
    %843 = vset.pattern.permute.xlu0 0
    %844 = vperm.xlu0 %843, %v766
    %v845 = vpop.permute.xlu0 %844
    %v847 = vmul.f32 %v735, %v770
    %v848 = vmul.f32 %v736, %v775
    %v849 = vmul.f32 %v737, %v780
    %v850 = vmul.f32 %v738, %v785
    %v851 = vmul.f32 %v739, %v790
    %v852 = vmul.f32 %v740, %v795
    %v853 = vmul.f32 %v741, %v800
    %v854 = vmul.f32 %v742, %v805
    %v855 = vmul.f32 %v743, %v810
    %v856 = vmul.f32 %v744, %v815
    %v857 = vmul.f32 %v745, %v820
    %v858 = vmul.f32 %v746, %v825
    %v859 = vmul.f32 %v747, %v830
    %v860 = vmul.f32 %v748, %v835
    %v861 = vmul.f32 %v749, %v840
    %v862 = vmul.f32 %v750, %v845
    %v863 = vadd.f32 %v847, %v848
    %v864 = vadd.f32 %v863, %v849
    %v865 = vadd.f32 %v864, %v850
    %v866 = vadd.f32 %v865, %v851
    %v867 = vadd.f32 %v866, %v852
    %v868 = vadd.f32 %v867, %v853
    %v869 = vadd.f32 %v868, %v854
    %v870 = vadd.f32 %v869, %v855
    %v871 = vadd.f32 %v870, %v856
    %v872 = vadd.f32 %v871, %v857
    %v873 = vadd.f32 %v872, %v858
    %v874 = vadd.f32 %v873, %v859
    %v875 = vadd.f32 %v874, %v860
    %v876 = vadd.f32 %v875, %v861
    %v877 = vadd.f32 %v876, %v862
    %v878 = vrot.slane %v877, 4
    %v879 = vadd.f32 %v877, %v878
    %v880 = vrot.slane %v879, 2
    %v881 = vadd.f32 %v879, %v880
    %v882 = vrot.slane %v881, 1
    %v883 = vadd.f32 %v881, %v882
    %s884 = sld [smem:[#allocation2]]
    %v885 = vstv %s884
    %v886 = vadd.f32 %v883, %v885
    %887 = vst [vmem:[#allocation3] sm:$0x1] %v886
    // Predicated region
    $region30: #{tpu_custom_call.1} parent=1 // pred_check
      _
    $region31: #{tpu_custom_call.1} parent=1 // pred_check_branch
      %889 = sbr.rel (0) target = $region33
    $region32: #{tpu_custom_call.1} parent=1 // pred_region
      %s891 = ssub.s32 16, 16
      %892 = vsyncadd [#allocation4], %s891
      %s894 = sshll.u32 [#allocation3], 4
      %s895 = int_to_ptr.vmem [resolvable:$true] %s894
      %897 = dma.vmem_to_hbm [thread:$0]  %s895, 16, %s7, [#allocation4]
    $region33: #{tpu_custom_call.1} parent=1 // pred_fallthru
      _
    // Predicated region
    $region34: #{tpu_custom_call.1} parent=1 // pred_check
      _
    $region35: #{tpu_custom_call.1} parent=1 // pred_check_branch
      %899 = sbr.rel (0) target = $region37
    $region36: #{tpu_custom_call.1} parent=1 // pred_region
      %900 = dma.done [#allocation4], 16
    $region37: #{tpu_custom_call.1} parent=1 // pred_fallthru
      _
    %901 = vsyncpa [#allocation4], 1

</llo_original>
